<compile_context>
chip_gen: v7x
topology: tpu7x:2x2x1
jax: 0.10.0
libtpu: 0.0.40
codegen_flags: <defaults>
</compile_context>

<pallas_src>
import math
import jax
import jax.numpy as jnp
from jax.experimental import pallas as pl
from jax.experimental.pallas import tpu as pltpu

BN_EPS = 1e-5


def dense_bn_kernel(x_ref, w_ref, gamma_ref, beta_ref, o_ref):
    # x_ref: (Bt, N, F_IN)  w_ref: (F_IN, F_OUT)  gamma/beta: (1, F_OUT)  o_ref: (Bt, N, F_OUT)
    bt, n, f_in = x_ref.shape
    f_out = w_ref.shape[1]

    # One fused MXU matmul over all problems in this block (M = Bt*N).  The reshape only
    # merges leading dims (last dim unchanged) so it is layout-free.  fp32 accumulation.
    # (Linear bias intentionally omitted: BatchNorm cancels it.)
    x2 = x_ref[...].reshape(bt * n, f_in)
    y = jnp.dot(x2, w_ref[...], preferred_element_type=jnp.float32)
    y = y.reshape(bt, n, f_out)

    # BatchNorm1d training-mode batch statistics, per problem (reduce over the N/row axis),
    # kept in f32 with the numerically safe E[(x-mean)^2] form.
    mean = jnp.mean(y, axis=1, keepdims=True)              # (Bt, 1, F_OUT)
    centered = y - mean
    var = jnp.mean(centered * centered, axis=1, keepdims=True)

    # Fold gamma into inv_std on the (Bt, 1, F_OUT) row, then one mul + one add on the tensor.
    scale = jax.lax.rsqrt(var + BN_EPS) * gamma_ref[...]   # broadcasts (1,F_OUT)
    # Activation sigma = identity.
    o_ref[...] = (centered * scale + beta_ref[...]).astype(o_ref.dtype)


def dense_forward_batched(x, weight, gamma, beta, bias=None, *,
                          matmul_dtype=jnp.bfloat16, num_grid_splits=None):
    """x: [B, N, F_IN] batch of independent Dense problems sharing (weight, gamma, beta).

    `bias` is accepted but unused: it is mathematically cancelled by BatchNorm.
    `matmul_dtype` controls only the MXU input dtype; accumulation and BN math stay f32.
    """
    del bias  # cancelled by the BatchNorm that immediately follows the linear layer
    b, n, f_in = x.shape
    f_in_w, f_out = weight.shape
    assert f_in == f_in_w

    # One grid step per TensorCore when possible (v7x has 2 TCs); a single fused step
    # otherwise.  Every step still fuses all of its problems into one matmul.
    if num_grid_splits is None:
        num_grid_splits = 2 if (b % 2 == 0 and b >= 2) else 1
    assert b % num_grid_splits == 0, "num_grid_splits must divide the problem batch"
    bt = b // num_grid_splits

    x_mm = x.astype(matmul_dtype)
    w_mm = weight.astype(matmul_dtype)
    g2 = gamma.reshape(1, f_out).astype(jnp.float32)
    be2 = beta.reshape(1, f_out).astype(jnp.float32)

    itemsize = jnp.dtype(matmul_dtype).itemsize
    flops = 2 * b * n * f_in * f_out
    bytes_accessed = (itemsize * (b * n * f_in + f_in * f_out)
                      + 4 * (2 * f_out + b * n * f_out))

    return pl.pallas_call(
        dense_bn_kernel,
        out_shape=jax.ShapeDtypeStruct((b, n, f_out), jnp.float32),
        grid=(num_grid_splits,),
        in_specs=[
            # block of Bt problems per grid step (M-fusion happens inside the kernel)
            pl.BlockSpec((bt, n, f_in), lambda i: (i, 0, 0),
                         memory_space=pltpu.MemorySpace.VMEM),
            # shared params: constant index_map -> VMEM-resident across the grid
            pl.BlockSpec((f_in, f_out), lambda i: (0, 0),
                         memory_space=pltpu.MemorySpace.VMEM),
            pl.BlockSpec((1, f_out), lambda i: (0, 0),
                         memory_space=pltpu.MemorySpace.VMEM),
            pl.BlockSpec((1, f_out), lambda i: (0, 0),
                         memory_space=pltpu.MemorySpace.VMEM),
        ],
        out_specs=pl.BlockSpec((bt, n, f_out), lambda i: (i, 0, 0),
                               memory_space=pltpu.MemorySpace.VMEM),
        compiler_params=pltpu.CompilerParams(
            dimension_semantics=("parallel",)),   # independent problem blocks -> megacore shardable
        cost_estimate=pl.CostEstimate(flops=flops,
                                      transcendentals=b * f_out,
                                      bytes_accessed=bytes_accessed),
    )(x_mm, w_mm, g2, be2)


def dense_forward(x, weight, gamma, beta, bias=None, **kwargs):
    """Single-problem interface matching the module: x [N, F_IN] -> [N, F_OUT].

    (The module's `adj` argument is ignored by Dense.forward and therefore not taken.)
    """
    out = dense_forward_batched(x[None], weight, gamma, beta, bias, **kwargs)
    return out[0]


def _reference(x, weight, bias, gamma, beta, matmul_dtype=jnp.float32):
    # Pure-JAX reference matching the PyTorch module (bias INCLUDED to prove cancellation).
    # `matmul_dtype` rounds the matmul inputs the same way the kernel does (bf16 path check).
    xq = x.astype(matmul_dtype).astype(jnp.float32)
    wq = weight.astype(matmul_dtype).astype(jnp.float32)
    y = xq @ wq + bias
    m = y.mean(axis=0, keepdims=True)
    v = ((y - m) ** 2).mean(axis=0, keepdims=True)
    return (y - m) / jnp.sqrt(v + BN_EPS) * gamma + beta


if __name__ == "__main__":
    # Small shapes consistent with the module: B independent problems of N nodes,
    # in_features -> out_features.  F_OUT is a multiple of 128 (lane-dense output stores).
    B, N, F_IN, F_OUT = 4, 64, 32, 128

    key = jax.random.PRNGKey(0)
    kx, kw, kb = jax.random.split(key, 3)

    # Parameter init mirroring reset_parameters(): uniform(-stdv, stdv), stdv = 1/sqrt(out_features)
    stdv = 1.0 / math.sqrt(F_OUT)
    weight = jax.random.uniform(kw, (F_IN, F_OUT), jnp.float32, -stdv, stdv)
    bias = jax.random.uniform(kb, (F_OUT,), jnp.float32, -stdv, stdv)
    # BatchNorm1d affine params at init
    gamma = jnp.ones((F_OUT,), jnp.float32)
    beta = jnp.zeros((F_OUT,), jnp.float32)

    x_batch = jax.random.normal(kx, (B, N, F_IN), jnp.float32)
    # adj is ignored by Dense.forward ("Do not consider adj"), so it is not an input.

    # Default fast path: bf16 MXU inputs, f32 accumulation + f32 BN math, 2 parallel grid steps.
    out_bf16 = jax.block_until_ready(
        dense_forward_batched(x_batch, weight, gamma, beta, bias))

    # f32 matmul path, fully collapsed to a single grid step (tight check incl. bias cancellation).
    out_f32 = jax.block_until_ready(
        dense_forward_batched(x_batch, weight, gamma, beta, bias,
                              matmul_dtype=jnp.float32, num_grid_splits=1))

    # Single-problem (module-shaped) interface.
    out_single = jax.block_until_ready(
        dense_forward(x_batch[0], weight, gamma, beta, bias, matmul_dtype=jnp.float32))

    # Correctness vs references that DO include the bias (BatchNorm cancels it).
    for i in range(B):
        ref_bf16 = _reference(x_batch[i], weight, bias, gamma, beta, matmul_dtype=jnp.bfloat16)
        ref_f32 = _reference(x_batch[i], weight, bias, gamma, beta)
        assert jnp.allclose(out_bf16[i], ref_bf16, atol=1e-3, rtol=1e-3), f"bf16 mismatch (batch {i})"
        assert jnp.allclose(out_f32[i], ref_f32, atol=2e-4, rtol=2e-4), f"f32 mismatch (batch {i})"
    ref0 = _reference(x_batch[0], weight, bias, gamma, beta)
    assert jnp.allclose(out_single, ref0, atol=2e-4, rtol=2e-4), "mismatch (single)"

    print("KERNEL_OK")
</pallas_src>

<mosaic_0001>
module attributes {stable_mosaic.version = 11 : i64} {
  func.func @dense_bn_kernel(%arg0: i32, %arg1: memref<2x64x32xbf16, #tpu.memory_space<vmem>>, %arg2: memref<32x128xbf16, #tpu.memory_space<vmem>>, %arg3: memref<1x128xf32, #tpu.memory_space<vmem>>, %arg4: memref<1x128xf32, #tpu.memory_space<vmem>>, %arg5: memref<2x64x128xf32, #tpu.memory_space<vmem>>) attributes {dimension_semantics = [#tpu.dimension_semantics<parallel>], iteration_bounds = array<i64: 2>, scalar_prefetch = 0 : i64, scratch_operands = 0 : i64, tpu.core_type = #tpu.core_type<tc>, window_params = [{transform_indices = @transform_0, window_bounds = array<i64: 2, 64, 32>}, {pipeline_mode = #tpu.pipeline_mode<synchronous>, transform_indices = @transform_1, window_bounds = array<i64: 32, 128>}, {pipeline_mode = #tpu.pipeline_mode<synchronous>, transform_indices = @transform_2, window_bounds = array<i64: 1, 128>}, {pipeline_mode = #tpu.pipeline_mode<synchronous>, transform_indices = @transform_3, window_bounds = array<i64: 1, 128>}, {transform_indices = @transform_4, window_bounds = array<i64: 2, 64, 128>}]} {
    %c0 = arith.constant 0 : index
    %c0_0 = arith.constant 0 : index
    %c0_1 = arith.constant 0 : index
    %0 = vector.load %arg1[%c0, %c0_0, %c0_1] : memref<2x64x32xbf16, #tpu.memory_space<vmem>>, vector<2x64x32xbf16>
    %1 = vector.shape_cast %0 : vector<2x64x32xbf16> to vector<128x32xbf16>
    %c0_2 = arith.constant 0 : index
    %c0_3 = arith.constant 0 : index
    %2 = vector.load %arg2[%c0_2, %c0_3] : memref<32x128xbf16, #tpu.memory_space<vmem>>, vector<32x128xbf16>
    %cst = arith.constant dense<0.000000e+00> : vector<128x128xf32>
    %3 = tpu.matmul %1, %2, %cst {dimension_numbers = #tpu.dot_dimension_numbers<[1], [0], [0], [1], [0, 0, 1, 1], [], []>} : vector<128x32xbf16>, vector<32x128xbf16>, vector<128x128xf32> -> vector<128x128xf32>
    %4 = vector.shape_cast %3 : vector<128x128xf32> to vector<2x64x128xf32>
    %cst_4 = arith.constant dense<0.000000e+00> : vector<2x128xf32>
    %5 = vector.multi_reduction <add>, %4, %cst_4 [1] : vector<2x64x128xf32> to vector<2x128xf32>
    %6 = vector.shape_cast %5 : vector<2x128xf32> to vector<2x1x128xf32>
    %cst_5 = arith.constant 6.400000e+01 : f32
    %7 = vector.broadcast %cst_5 : f32 to vector<2x1x128xf32>
    %8 = arith.divf %6, %7 : vector<2x1x128xf32>
    %9 = vector.broadcast %8 : vector<2x1x128xf32> to vector<2x64x128xf32>
    %10 = arith.subf %4, %9 : vector<2x64x128xf32>
    %11 = arith.mulf %10, %10 : vector<2x64x128xf32>
    %cst_6 = arith.constant dense<0.000000e+00> : vector<2x128xf32>
    %12 = vector.multi_reduction <add>, %11, %cst_6 [1] : vector<2x64x128xf32> to vector<2x128xf32>
    %13 = vector.shape_cast %12 : vector<2x128xf32> to vector<2x1x128xf32>
    %cst_7 = arith.constant 6.400000e+01 : f32
    %14 = vector.broadcast %cst_7 : f32 to vector<2x1x128xf32>
    %15 = arith.divf %13, %14 : vector<2x1x128xf32>
    %cst_8 = arith.constant 9.99999974E-6 : f32
    %16 = vector.broadcast %cst_8 : f32 to vector<2x1x128xf32>
    %17 = arith.addf %15, %16 : vector<2x1x128xf32>
    %18 = math.rsqrt %17 : vector<2x1x128xf32>
    %c0_9 = arith.constant 0 : index
    %c0_10 = arith.constant 0 : index
    %19 = vector.load %arg3[%c0_9, %c0_10] : memref<1x128xf32, #tpu.memory_space<vmem>>, vector<1x128xf32>
    %20 = vector.shape_cast %19 : vector<1x128xf32> to vector<1x1x128xf32>
    %21 = vector.broadcast %20 : vector<1x1x128xf32> to vector<2x1x128xf32>
    %22 = arith.mulf %18, %21 : vector<2x1x128xf32>
    %23 = vector.broadcast %22 : vector<2x1x128xf32> to vector<2x64x128xf32>
    %24 = arith.mulf %10, %23 : vector<2x64x128xf32>
    %c0_11 = arith.constant 0 : index
    %c0_12 = arith.constant 0 : index
    %25 = vector.load %arg4[%c0_11, %c0_12] : memref<1x128xf32, #tpu.memory_space<vmem>>, vector<1x128xf32>
    %26 = vector.shape_cast %25 : vector<1x128xf32> to vector<1x1x128xf32>
    %27 = vector.broadcast %26 : vector<1x1x128xf32> to vector<2x64x128xf32>
    %28 = arith.addf %24, %27 : vector<2x64x128xf32>
    %c0_13 = arith.constant 0 : index
    %c0_14 = arith.constant 0 : index
    %c0_15 = arith.constant 0 : index
    %29 = vector.load %arg5[%c0_13, %c0_14, %c0_15] : memref<2x64x128xf32, #tpu.memory_space<vmem>>, vector<2x64x128xf32>
    tpu.vector_store %arg5[%c0_13, %c0_14, %c0_15], %28 {strides = array<i32>} : memref<2x64x128xf32, #tpu.memory_space<vmem>>, vector<2x64x128xf32>,
    return
  }
  func.func @transform_0(%arg0: i32) -> (i32, i32, i32) {
    %c0_i32 = arith.constant 0 : i32
    %c0_i32_0 = arith.constant 0 : i32
    %c0_i32_1 = arith.constant 0 : i32
    return %arg0, %c0_i32, %c0_i32_0 : i32, i32, i32
  }
  func.func @transform_1(%arg0: i32) -> (i32, i32) {
    %c0_i32 = arith.constant 0 : i32
    %c0_i32_0 = arith.constant 0 : i32
    %c0_i32_1 = arith.constant 0 : i32
    return %c0_i32, %c0_i32_0 : i32, i32
  }
  func.func @transform_2(%arg0: i32) -> (i32, i32) {
    %c0_i32 = arith.constant 0 : i32
    %c0_i32_0 = arith.constant 0 : i32
    %c0_i32_1 = arith.constant 0 : i32
    return %c0_i32, %c0_i32_0 : i32, i32
  }
  func.func @transform_3(%arg0: i32) -> (i32, i32) {
    %c0_i32 = arith.constant 0 : i32
    %c0_i32_0 = arith.constant 0 : i32
    %c0_i32_1 = arith.constant 0 : i32
    return %c0_i32, %c0_i32_0 : i32, i32
  }
  func.func @transform_4(%arg0: i32) -> (i32, i32, i32) {
    %c0_i32 = arith.constant 0 : i32
    %c0_i32_0 = arith.constant 0 : i32
    %c0_i32_1 = arith.constant 0 : i32
    return %arg0, %c0_i32, %c0_i32_0 : i32, i32, i32
  }
}

</mosaic_0001>

<llo_original>
// kernel: tpu_custom_call.1
$region0: #{tpu_custom_call.1}
  #allocation0 [shape = 'u32[]', space=smem, size = 0x4, offset = 0x4, fixed_abs, tag = 'smem constant byte address 0x4 - core index']
  #allocation1 [shape = 'u32[144,128]{1,0:T(1,128)}', space=vmem, size = 0x12000, scoped, tag = 'internal scratch']
  %s0 = inlined_call_operand.vmem [shape: bf16[4,64,32], index: 0, kind: input, shape index: {}]
  %s1 = inlined_call_operand.vmem [shape: bf16[32,128], index: 1, kind: input, shape index: {}]
  %s2 = inlined_call_operand.vmem [shape: f32[1,128], index: 2, kind: input, shape index: {}]
  %s3 = inlined_call_operand.vmem [shape: f32[1,128], index: 3, kind: input, shape index: {}]
  %s4 = inlined_call_operand.hbm [shape: f32[4,64,128], index: 4, kind: output, shape index: {}]
  %s5 = sld [smem:[#allocation0]]
  $region49: #{tpu_custom_call.1} parent=0
    _
  %s7 = ssub.s32 1, %s5
  %s8 = scalar_select 0, %s7, %s5
  $region1: #{tpu_custom_call.1} parent=0
    #allocation2 [shape = 'u8[131072]{0}', space=vmem, size = 0x20000, scoped, tag = 'output window, operand 0']
    #allocation3 [shape = 's32[2]{0}', space=sflag, size = 0x8, scoped, tag = 'scoped memory for tpu_custom_call.1']
    %9 = vsyncpa [#allocation3], 0
    %s10 = scalar_lea.sflag [#allocation3], 1
    %11 = vsyncpa %s10, 0
    loop: start=0, step=1, limit=4
    $region2: #{tpu_custom_call.1} parent=1 // loop_pre_header
      _
    $region3: #{tpu_custom_call.1} parent=1 // loop_header
      %s13 = sphi 0, %s17
      %p14 = scmp.ge.s32.totalorder %s13, 4
      %s23 = sphi 0, %s25
      %s26 = sphi 0, %s23
      %s27 = sphi 0, %s26
      %s43 = sphi 0, %s27
      %s47 = sphi 0, %s47
      %s49 = sphi 0, %s47
      %s50 = sphi 0, %s49
      %s64 = sphi 0, %s50
      %s68 = sphi 0, %s68
      %s70 = sphi 0, %s68
      %s71 = sphi 0, %s70
      %s85 = sphi 0, %s71
      %s89 = sphi 0, %s89
      %s91 = sphi 0, %s89
      %s92 = sphi 0, %s91
      %s106 = sphi 0, %s92
      %s112 = sphi 0, %s114
      %s115 = sphi 0, %s112
      %s116 = sphi 0, %s115
      %s132 = sphi 0, %s116
    $region4: #{tpu_custom_call.1} parent=1 // loop_header_branch
      %16 = sbr.rel (%p14) target = $region8
    $region5: #{tpu_custom_call.1} parent=1 // loop_body
      %s18 = ssub.s32 %s13, 1
      %s19 = ssub.s32 %s13, 2
      %s20 = sadd.s32 %s13, 1
      %s21 = ssub.s32 %s13, %s20
      %p22 = scmp.eq.s32.totalorder %s21, 0
      %s24 = sadd.s32 %s23, 1
      %s25 = scalar_select %p22, %s23, %s24
      %p28 = pneg %p22
      %p29 = scmp.eq.s32.totalorder %s13, 1
      %p30 = por %p28, %p29
      %p31 = scmp.ne.s32.totalorder %s23, %s26
      %p32 = scmp.eq.s32.totalorder %s13, 0
      %p33 = por %p31, %p32
      %p34 = scmp.ne.s32.totalorder %s23, %s26
      %p35 = scmp.eq.s32.totalorder %s18, 1
      %p36 = por %p34, %p35
      %p37 = scmp.ne.s32.totalorder %s26, %s27
      %p38 = scmp.eq.s32.totalorder %s18, 0
      %p39 = por %p37, %p38
      %p40 = scmp.ne.s32.totalorder %s26, %s27
      %p41 = scmp.eq.s32.totalorder %s19, 1
      %p42 = por %p40, %p41
      %p44 = scmp.ne.s32.totalorder %s27, %s43
      %p45 = scmp.eq.s32.totalorder %s19, 0
      %p46 = por %p44, %p45
      %s48 = sadd.s32 %s47, 1
      %p51 = scmp.eq.s32.totalorder %s13, 1
      %p52 = scmp.ne.s32.totalorder %s47, %s49
      %p53 = scmp.eq.s32.totalorder %s13, 0
      %p54 = por %p52, %p53
      %p55 = scmp.ne.s32.totalorder %s47, %s49
      %p56 = scmp.eq.s32.totalorder %s18, 1
      %p57 = por %p55, %p56
      %p58 = scmp.ne.s32.totalorder %s49, %s50
      %p59 = scmp.eq.s32.totalorder %s18, 0
      %p60 = por %p58, %p59
      %p61 = scmp.ne.s32.totalorder %s49, %s50
      %p62 = scmp.eq.s32.totalorder %s19, 1
      %p63 = por %p61, %p62
      %p65 = scmp.ne.s32.totalorder %s50, %s64
      %p66 = scmp.eq.s32.totalorder %s19, 0
      %p67 = por %p65, %p66
      %s69 = sadd.s32 %s68, 1
      %p72 = scmp.eq.s32.totalorder %s13, 1
      %p73 = scmp.ne.s32.totalorder %s68, %s70
      %p74 = scmp.eq.s32.totalorder %s13, 0
      %p75 = por %p73, %p74
      %p76 = scmp.ne.s32.totalorder %s68, %s70
      %p77 = scmp.eq.s32.totalorder %s18, 1
      %p78 = por %p76, %p77
      %p79 = scmp.ne.s32.totalorder %s70, %s71
      %p80 = scmp.eq.s32.totalorder %s18, 0
      %p81 = por %p79, %p80
      %p82 = scmp.ne.s32.totalorder %s70, %s71
      %p83 = scmp.eq.s32.totalorder %s19, 1
      %p84 = por %p82, %p83
      %p86 = scmp.ne.s32.totalorder %s71, %s85
      %p87 = scmp.eq.s32.totalorder %s19, 0
      %p88 = por %p86, %p87
      %s90 = sadd.s32 %s89, 1
      %p93 = scmp.eq.s32.totalorder %s13, 1
      %p94 = scmp.ne.s32.totalorder %s89, %s91
      %p95 = scmp.eq.s32.totalorder %s13, 0
      %p96 = por %p94, %p95
      %p97 = scmp.ne.s32.totalorder %s89, %s91
      %p98 = scmp.eq.s32.totalorder %s18, 1
      %p99 = por %p97, %p98
      %p100 = scmp.ne.s32.totalorder %s91, %s92
      %p101 = scmp.eq.s32.totalorder %s18, 0
      %p102 = por %p100, %p101
      %p103 = scmp.ne.s32.totalorder %s91, %s92
      %p104 = scmp.eq.s32.totalorder %s19, 1
      %p105 = por %p103, %p104
      %p107 = scmp.ne.s32.totalorder %s92, %s106
      %p108 = scmp.eq.s32.totalorder %s19, 0
      %p109 = por %p107, %p108
      %s110 = ssub.s32 %s13, %s20
      %p111 = scmp.eq.s32.totalorder %s110, 0
      %s113 = sadd.s32 %s112, 1
      %s114 = scalar_select %p111, %s112, %s113
      %p117 = pneg %p111
      %p118 = scmp.eq.s32.totalorder %s13, 1
      %p119 = por %p117, %p118
      %p120 = scmp.ne.s32.totalorder %s112, %s115
      %p121 = scmp.eq.s32.totalorder %s13, 0
      %p122 = por %p120, %p121
      %p123 = scmp.ne.s32.totalorder %s112, %s115
      %p124 = scmp.eq.s32.totalorder %s18, 1
      %p125 = por %p123, %p124
      %p126 = scmp.ne.s32.totalorder %s115, %s116
      %p127 = scmp.eq.s32.totalorder %s18, 0
      %p128 = por %p126, %p127
      %p129 = scmp.ne.s32.totalorder %s115, %s116
      %p130 = scmp.eq.s32.totalorder %s19, 1
      %p131 = por %p129, %p130
      %p133 = scmp.ne.s32.totalorder %s116, %s132
      %p134 = scmp.eq.s32.totalorder %s19, 0
      %p135 = por %p133, %p134
      %p136 = scmp.le.s32.totalorder 1, %s13
      %p137 = scmp.lt.s32.totalorder %s13, 3
      %p138 = pnand %p136, %p137
      %p139 = pneg %p138
      // Predicated region
      $region9: #{tpu_custom_call.1} parent=5 // pred_check
        _
      $region10: #{tpu_custom_call.1} parent=5 // pred_check_branch
        %141 = sbr.rel (%p138) target = $region12
      $region11: #{tpu_custom_call.1} parent=5 // pred_region
        %s142 = ssub.s32 %s13, 1
        // Predicated region
        $region13: #{tpu_custom_call.1} parent=11 // pred_check
          %p143 = pneg %p60
        $region14: #{tpu_custom_call.1} parent=11 // pred_check_branch
          %145 = sbr.rel (%p143) target = $region16
        $region15: #{tpu_custom_call.1} parent=11 // pred_region
          _
        $region16: #{tpu_custom_call.1} parent=11 // pred_fallthru
          _
        // Predicated region
        $region17: #{tpu_custom_call.1} parent=11 // pred_check
          %p146 = pneg %p81
        $region18: #{tpu_custom_call.1} parent=11 // pred_check_branch
          %148 = sbr.rel (%p146) target = $region20
        $region19: #{tpu_custom_call.1} parent=11 // pred_region
          _
        $region20: #{tpu_custom_call.1} parent=11 // pred_fallthru
          _
        // Predicated region
        $region21: #{tpu_custom_call.1} parent=11 // pred_check
          %p149 = pneg %p102
        $region22: #{tpu_custom_call.1} parent=11 // pred_check_branch
          %151 = sbr.rel (%p149) target = $region24
        $region23: #{tpu_custom_call.1} parent=11 // pred_region
          _
        $region24: #{tpu_custom_call.1} parent=11 // pred_fallthru
          _
      $region12: #{tpu_custom_call.1} parent=5 // pred_fallthru
        _
      %p152 = scmp.lt.s32.totalorder %s13, 2
      // Predicated region
      $region25: #{tpu_custom_call.1} parent=5 // pred_check
        %p153 = pneg %p152
      $region26: #{tpu_custom_call.1} parent=5 // pred_check_branch
        %155 = sbr.rel (%p153) target = $region28
      $region27: #{tpu_custom_call.1} parent=5 // pred_region
        // Predicated region
        $region29: #{tpu_custom_call.1} parent=27 // pred_check
          %p156 = pneg %p33
        $region30: #{tpu_custom_call.1} parent=27 // pred_check_branch
          %158 = sbr.rel (%p156) target = $region32
        $region31: #{tpu_custom_call.1} parent=27 // pred_region
          %s159 = smul.u32 2, %s13
          %p160 = scmp.lt.s32.totalorder %s159, 3
          %s161 = scalar_select %p160, %s159, 3
          %s162 = smul.addr %s161, 8
          %s163 = smul.addr %s162, 4
          %s164 = scalar_lea.vmem %s0, %s163
          %s165 = smul.u32 2, %s13
        $region32: #{tpu_custom_call.1} parent=27 // pred_fallthru
          _
      $region28: #{tpu_custom_call.1} parent=5 // pred_fallthru
        _
      %p166 = scmp.le.s32.totalorder 1, %s13
      %p167 = scmp.lt.s32.totalorder %s13, 3
      %p168 = pnand %p166, %p167
      %p169 = pneg %p168
      // Predicated region
      $region33: #{tpu_custom_call.1} parent=5 // pred_check
        _
      $region34: #{tpu_custom_call.1} parent=5 // pred_check_branch
        %171 = sbr.rel (%p168) target = $region36
      $region35: #{tpu_custom_call.1} parent=5 // pred_region
        %s172 = ssub.s32 %s13, 1
        %s173 = smul.u32 2, %s18
        %p174 = scmp.lt.s32.totalorder %s173, 3
        %s175 = scalar_select %p174, %s173, 3
        %s176 = smul.addr %s175, 8
        %s177 = smul.addr %s176, 4
        %s178 = scalar_lea.vmem %s0, %s177
        %p179 = pneg %p39
        %p180 = pneg %p36
        %p181 = pneg %p60
        %p182 = pneg %p57
        %p183 = pneg %p81
        %p184 = pneg %p78
        %p185 = pneg %p102
        %p186 = pneg %p99
        %p187 = pneg %p128
        %p188 = pneg %p125
        %s189 = sand.u32 %s115, 1
        %s190 = scalar_lea.sflag [#allocation3], %s189
        %s191 = sand.u32 %s115, 1
        %s192 = smul.addr %s191, 128
        %s193 = scalar_lea.vmem [#allocation2], %s192
        %s194 = smul.u32 2, %s18
        %p195 = scmp.lt.s32.totalorder %s194, 3
        %s196 = scalar_select %p195, %s194, 3
        %s197 = smul.addr %s196, 8
        %s198 = smul.addr %s197, 4
        %s199 = scalar_lea.vmem %s0, %s198
        %s200 = smul.u32 2, %s18
        %s201 = smul.u32 2, %s18
        %v203 = vld [vmem:[%s199] sm:$0xf]
        %v204 = vld [vmem:[%s199 + $0x4] sm:$0xf]
        %v205 = vld [vmem:[%s199 + $0x8] sm:$0xf]
        %v206 = vld [vmem:[%s199 + $0xc] sm:$0xf]
        %v207 = vld [vmem:[%s199 + $0x10] sm:$0xf]
        %v208 = vld [vmem:[%s199 + $0x14] sm:$0xf]
        %v209 = vld [vmem:[%s199 + $0x18] sm:$0xf]
        %v210 = vld [vmem:[%s199 + $0x1c] sm:$0xf]
        %v211 = vld [vmem:[%s199 + $0x20] sm:$0xf]
        %v212 = vld [vmem:[%s199 + $0x24] sm:$0xf]
        %v213 = vld [vmem:[%s199 + $0x28] sm:$0xf]
        %v214 = vld [vmem:[%s199 + $0x2c] sm:$0xf]
        %v215 = vld [vmem:[%s199 + $0x30] sm:$0xf]
        %v216 = vld [vmem:[%s199 + $0x34] sm:$0xf]
        %v217 = vld [vmem:[%s199 + $0x38] sm:$0xf]
        %v218 = vld [vmem:[%s199 + $0x3c] sm:$0xf]
        %v219 = vld [vmem:[%s1] sm:$0xf]
        %v220 = vld [vmem:[%s1 + $0x4] sm:$0xf]
        %v221 = vld [vmem:[%s1 + $0x8] sm:$0xf]
        %v222 = vld [vmem:[%s1 + $0xc] sm:$0xf]
        %v239 = vunpack.c.l.b16 %v203
        %v240 = vunpack.c.l.b16 %v204
        %v241 = vunpack.c.l.b16 %v205
        %v242 = vunpack.c.l.b16 %v206
        %v243 = vunpack.c.l.b16 %v207
        %v244 = vunpack.c.l.b16 %v208
        %v245 = vunpack.c.l.b16 %v209
        %v246 = vunpack.c.l.b16 %v210
        %v247 = vunpack.c.l.b16 %v211
        %v248 = vunpack.c.l.b16 %v212
        %v249 = vunpack.c.l.b16 %v213
        %v250 = vunpack.c.l.b16 %v214
        %v251 = vunpack.c.l.b16 %v215
        %v252 = vunpack.c.l.b16 %v216
        %v253 = vunpack.c.l.b16 %v217
        %v254 = vunpack.c.l.b16 %v218
        %v255 = vpack.c.b16 %v240, %v239
        %v256 = vpack.c.b16 %v242, %v241
        %v257 = vpack.c.b16 %v244, %v243
        %v258 = vpack.c.b16 %v246, %v245
        %v259 = vpack.c.b16 %v248, %v247
        %v260 = vpack.c.b16 %v250, %v249
        %v261 = vpack.c.b16 %v252, %v251
        %v262 = vpack.c.b16 %v254, %v253
        %v267 = vunpack.c.l.b16 %v219
        %v268 = vunpack.c.l.b16 %v220
        %v269 = vunpack.c.l.b16 %v221
        %v270 = vunpack.c.l.b16 %v222
        %v271 = vpack.c.b16 %v268, %v267
        %v272 = vpack.c.b16 %v270, %v269
        %vm275 = vcmask 261120
        %v277 = vsel %vm275, %v255, 0
        %v280 = vsel %vm275, %v256, 0
        %v283 = vsel %vm275, %v257, 0
        %v286 = vsel %vm275, %v258, 0
        %v289 = vsel %vm275, %v259, 0
        %v292 = vsel %vm275, %v260, 0
        %v295 = vsel %vm275, %v261, 0
        %v298 = vsel %vm275, %v262, 0
        %300 = vmatprep.subr.bf16.mxu0 0
        %301 = vmatpush1.bf16.msra.mxu0 %v271
        %302 = vmatprep.subr.bf16.mxu0 0
        %303 = vmatpush1.bf16.msra.mxu0 %v272
        %304 = vmatprep.subr.bf16.mxu0 0
        %305 = vmatpush1.bf16.msra.mxu0 0
        %306 = vmatprep.subr.bf16.mxu0 0
        %307 = vmatpush1.bf16.msra.mxu0 0
        %308 = vmatprep.subr.bf16.mxu0 0
        %309 = vmatpush1.bf16.msra.mxu0 0
        %310 = vmatprep.subr.bf16.mxu0 0
        %311 = vmatpush1.bf16.msra.mxu0 0
        %312 = vmatprep.subr.bf16.mxu0 0
        %313 = vmatpush1.bf16.msra.mxu0 0
        %314 = vmatprep.subr.bf16.mxu0 0
        %315 = vmatpush1.bf16.msra.mxu0 0
        %316 = vmatprep.subr.bf16.mxu0 0
        %317 = vmatpush1.bf16.msra.mxu0 0
        %318 = vmatprep.subr.bf16.mxu0 0
        %319 = vmatpush1.bf16.msra.mxu0 0
        %320 = vmatprep.subr.bf16.mxu0 0
        %321 = vmatpush1.bf16.msra.mxu0 0
        %322 = vmatprep.subr.bf16.mxu0 0
        %323 = vmatpush1.bf16.msra.mxu0 0
        %324 = vmatprep.subr.bf16.mxu0 0
        %325 = vmatpush1.bf16.msra.mxu0 0
        %326 = vmatprep.subr.bf16.mxu0 0
        %327 = vmatpush1.bf16.msra.mxu0 0
        %328 = vmatprep.subr.bf16.mxu0 0
        %329 = vmatpush1.bf16.msra.mxu0 0
        %330 = vmatprep.subr.bf16.mxu0 0
        %331 = vmatpush1.bf16.msra.mxu0 0
        %332 = vmatprep.mubr.bf16.mxu0 0
        %333 = vmatmul.mubr.bf16.gmra.mrb[0].mxu0 %v277
        %v334 = vpop.f32.mrb[0].mxu0
        %v335 = vadd.f32 0.0, %v334
        %v336 = vpop.f32.mrb[0].mxu0
        %v337 = vpop.f32.mrb[0].mxu0
        %v338 = vadd.f32 0.0, %v337
        %v339 = vpop.f32.mrb[0].mxu0
        %340 = vmatprep.mubr.bf16.mxu0 0
        %341 = vmatmul.mubr.bf16.gmra.mrb[0].mxu0 %v280
        %v342 = vpop.f32.mrb[0].mxu0
        %v343 = vadd.f32 0.0, %v342
        %v344 = vpop.f32.mrb[0].mxu0
        %v345 = vpop.f32.mrb[0].mxu0
        %v346 = vadd.f32 0.0, %v345
        %v347 = vpop.f32.mrb[0].mxu0
        %348 = vmatprep.mubr.bf16.mxu0 0
        %349 = vmatmul.mubr.bf16.gmra.mrb[0].mxu0 %v283
        %v350 = vpop.f32.mrb[0].mxu0
        %v351 = vadd.f32 0.0, %v350
        %v352 = vpop.f32.mrb[0].mxu0
        %v353 = vpop.f32.mrb[0].mxu0
        %v354 = vadd.f32 0.0, %v353
        %v355 = vpop.f32.mrb[0].mxu0
        %356 = vmatprep.mubr.bf16.mxu0 0
        %357 = vmatmul.mubr.bf16.gmra.mrb[0].mxu0 %v286
        %v358 = vpop.f32.mrb[0].mxu0
        %v359 = vadd.f32 0.0, %v358
        %v360 = vpop.f32.mrb[0].mxu0
        %v361 = vpop.f32.mrb[0].mxu0
        %v362 = vadd.f32 0.0, %v361
        %v363 = vpop.f32.mrb[0].mxu0
        %364 = vmatprep.mubr.bf16.mxu0 0
        %365 = vmatmul.mubr.bf16.gmra.mrb[0].mxu0 %v289
        %v366 = vpop.f32.mrb[0].mxu0
        %v367 = vadd.f32 0.0, %v366
        %v368 = vpop.f32.mrb[0].mxu0
        %v369 = vpop.f32.mrb[0].mxu0
        %v370 = vadd.f32 0.0, %v369
        %v371 = vpop.f32.mrb[0].mxu0
        %372 = vmatprep.mubr.bf16.mxu0 0
        %373 = vmatmul.mubr.bf16.gmra.mrb[0].mxu0 %v292
        %v374 = vpop.f32.mrb[0].mxu0
        %v375 = vadd.f32 0.0, %v374
        %v376 = vpop.f32.mrb[0].mxu0
        %v377 = vpop.f32.mrb[0].mxu0
        %v378 = vadd.f32 0.0, %v377
        %v379 = vpop.f32.mrb[0].mxu0
        %380 = vmatprep.mubr.bf16.mxu0 0
        %381 = vmatmul.mubr.bf16.gmra.mrb[0].mxu0 %v295
        %v382 = vpop.f32.mrb[0].mxu0
        %v383 = vadd.f32 0.0, %v382
        %v384 = vpop.f32.mrb[0].mxu0
        %v385 = vpop.f32.mrb[0].mxu0
        %v386 = vadd.f32 0.0, %v385
        %v387 = vpop.f32.mrb[0].mxu0
        %388 = vmatprep.mubr.bf16.mxu0 0
        %389 = vmatmul.mubr.bf16.gmra.mrb[0].mxu0 %v298
        %v390 = vpop.f32.mrb[0].mxu0
        %v391 = vadd.f32 0.0, %v390
        %v392 = vpop.f32.mrb[0].mxu0
        %v393 = vpop.f32.mrb[0].mxu0
        %v394 = vadd.f32 0.0, %v393
        %v395 = vpop.f32.mrb[0].mxu0
        %396 = vdwg.mxu0
        %v397 = vadd.f32 %v335, %v338
        %v398 = vadd.f32 %v397, %v343
        %v399 = vadd.f32 %v398, %v346
        %v400 = vadd.f32 %v399, %v351
        %v401 = vadd.f32 %v400, %v354
        %v402 = vadd.f32 %v401, %v359
        %v403 = vadd.f32 %v402, %v362
        %v404 = vrot.slane %v403, 4
        %v405 = vadd.f32 %v403, %v404
        %v406 = vrot.slane %v405, 2
        %v407 = vadd.f32 %v405, %v406
        %v408 = vrot.slane %v407, 1
        %v409 = vadd.f32 %v407, %v408
        %v410 = vadd.f32 %v367, %v370
        %v411 = vadd.f32 %v410, %v375
        %v412 = vadd.f32 %v411, %v378
        %v413 = vadd.f32 %v412, %v383
        %v414 = vadd.f32 %v413, %v386
        %v415 = vadd.f32 %v414, %v391
        %v416 = vadd.f32 %v415, %v394
        %v417 = vrot.slane %v416, 4
        %v418 = vadd.f32 %v416, %v417
        %v419 = vrot.slane %v418, 2
        %v420 = vadd.f32 %v418, %v419
        %v421 = vrot.slane %v420, 1
        %v422 = vadd.f32 %v420, %v421
        %v423 = vrcp.pop 64.0
        %v424 = vmul.f32 %v409, %v423
        %v425 = vmul.f32 %v422, %v423
        %v426 = vsub.f32 %v335, %v424
        %v427 = vsub.f32 %v338, %v424
        %v428 = vsub.f32 %v343, %v424
        %v429 = vsub.f32 %v346, %v424
        %v430 = vsub.f32 %v351, %v424
        %v431 = vsub.f32 %v354, %v424
        %v432 = vsub.f32 %v359, %v424
        %v433 = vsub.f32 %v362, %v424
        %v434 = vsub.f32 %v367, %v425
        %v435 = vsub.f32 %v370, %v425
        %v436 = vsub.f32 %v375, %v425
        %v437 = vsub.f32 %v378, %v425
        %v438 = vsub.f32 %v383, %v425
        %v439 = vsub.f32 %v386, %v425
        %v440 = vsub.f32 %v391, %v425
        %v441 = vsub.f32 %v394, %v425
        %v442 = vmul.f32 %v426, %v426
        %v443 = vmul.f32 %v427, %v427
        %v444 = vmul.f32 %v428, %v428
        %v445 = vmul.f32 %v429, %v429
        %v446 = vmul.f32 %v430, %v430
        %v447 = vmul.f32 %v431, %v431
        %v448 = vmul.f32 %v432, %v432
        %v449 = vmul.f32 %v433, %v433
        %v450 = vmul.f32 %v434, %v434
        %v451 = vmul.f32 %v435, %v435
        %v452 = vmul.f32 %v436, %v436
        %v453 = vmul.f32 %v437, %v437
        %v454 = vmul.f32 %v438, %v438
        %v455 = vmul.f32 %v439, %v439
        %v456 = vmul.f32 %v440, %v440
        %v457 = vmul.f32 %v441, %v441
        %v458 = vadd.f32 %v442, %v443
        %v459 = vadd.f32 %v458, %v444
        %v460 = vadd.f32 %v459, %v445
        %v461 = vadd.f32 %v460, %v446
        %v462 = vadd.f32 %v461, %v447
        %v463 = vadd.f32 %v462, %v448
        %v464 = vadd.f32 %v463, %v449
        %v465 = vrot.slane %v464, 4
        %v466 = vadd.f32 %v464, %v465
        %v467 = vrot.slane %v466, 2
        %v468 = vadd.f32 %v466, %v467
        %v469 = vrot.slane %v468, 1
        %v470 = vadd.f32 %v468, %v469
        %v471 = vadd.f32 %v450, %v451
        %v472 = vadd.f32 %v471, %v452
        %v473 = vadd.f32 %v472, %v453
        %v474 = vadd.f32 %v473, %v454
        %v475 = vadd.f32 %v474, %v455
        %v476 = vadd.f32 %v475, %v456
        %v477 = vadd.f32 %v476, %v457
        %v478 = vrot.slane %v477, 4
        %v479 = vadd.f32 %v477, %v478
        %v480 = vrot.slane %v479, 2
        %v481 = vadd.f32 %v479, %v480
        %v482 = vrot.slane %v481, 1
        %v483 = vadd.f32 %v481, %v482
        %v484 = vmul.f32 %v470, %v423
        %v485 = vmul.f32 %v483, %v423
        %v486 = vadd.f32 %v484, 1e-05
        %v487 = vadd.f32 %v485, 1e-05
        %v488 = vrsqrt.pop %v486
        %v489 = vrsqrt.pop %v487
        %v490 = vld [vmem:[%s2] sm:$0x1]
        %v491 = vmul.f32 %v488, %v490
        %v492 = vmul.f32 %v489, %v490
        %v493 = vlaneseq
        %v494 = vshrl.u32 %v493, 7
        %v495 = vsub.s32 0, %v494
        %v496 = vrot.slane %v491, %v495
        %v497 = vlaneseq
        %v498 = vshrl.u32 %v497, 7
        %v499 = vsub.s32 0, %v498
        %v500 = vrot.slane %v492, %v499
        %v501 = vmul.f32 %v426, %v496
        %v502 = vmul.f32 %v427, %v496
        %v503 = vmul.f32 %v428, %v496
        %v504 = vmul.f32 %v429, %v496
        %v505 = vmul.f32 %v430, %v496
        %v506 = vmul.f32 %v431, %v496
        %v507 = vmul.f32 %v432, %v496
        %v508 = vmul.f32 %v433, %v496
        %v509 = vmul.f32 %v434, %v500
        %v510 = vmul.f32 %v435, %v500
        %v511 = vmul.f32 %v436, %v500
        %v512 = vmul.f32 %v437, %v500
        %v513 = vmul.f32 %v438, %v500
        %v514 = vmul.f32 %v439, %v500
        %v515 = vmul.f32 %v440, %v500
        %v516 = vmul.f32 %v441, %v500
        %v517 = vld [vmem:[%s3] sm:$0x1]
        %v519 = vlaneseq
        %v520 = vshrl.u32 %v519, 7
        %v521 = vsub.s32 0, %v520
        %v522 = vrot.slane %v517, %v521
        %v524 = vadd.f32 %v501, %v522
        %v525 = vadd.f32 %v502, %v522
        %v526 = vadd.f32 %v503, %v522
        %v527 = vadd.f32 %v504, %v522
        %v528 = vadd.f32 %v505, %v522
        %v529 = vadd.f32 %v506, %v522
        %v530 = vadd.f32 %v507, %v522
        %v531 = vadd.f32 %v508, %v522
        %v532 = vadd.f32 %v509, %v522
        %v533 = vadd.f32 %v510, %v522
        %v534 = vadd.f32 %v511, %v522
        %v535 = vadd.f32 %v512, %v522
        %v536 = vadd.f32 %v513, %v522
        %v537 = vadd.f32 %v514, %v522
        %v538 = vadd.f32 %v515, %v522
        %v539 = vadd.f32 %v516, %v522
        %540 = vst [vmem:[%s193] sm:$0xff] %v524
        %541 = vst [vmem:[%s193 + $0x8] sm:$0xff] %v525
        %542 = vst [vmem:[%s193 + $0x10] sm:$0xff] %v526
        %543 = vst [vmem:[%s193 + $0x18] sm:$0xff] %v527
        %544 = vst [vmem:[%s193 + $0x20] sm:$0xff] %v528
        %545 = vst [vmem:[%s193 + $0x28] sm:$0xff] %v529
        %546 = vst [vmem:[%s193 + $0x30] sm:$0xff] %v530
        %547 = vst [vmem:[%s193 + $0x38] sm:$0xff] %v531
        %548 = vst [vmem:[%s193 + $0x40] sm:$0xff] %v532
        %549 = vst [vmem:[%s193 + $0x48] sm:$0xff] %v533
        %550 = vst [vmem:[%s193 + $0x50] sm:$0xff] %v534
        %551 = vst [vmem:[%s193 + $0x58] sm:$0xff] %v535
        %552 = vst [vmem:[%s193 + $0x60] sm:$0xff] %v536
        %553 = vst [vmem:[%s193 + $0x68] sm:$0xff] %v537
        %554 = vst [vmem:[%s193 + $0x70] sm:$0xff] %v538
        %555 = vst [vmem:[%s193 + $0x78] sm:$0xff] %v539
        %s556 = sand.u32 %s115, 1
        %s557 = scalar_lea.sflag [#allocation3], %s556
        %s558 = sand.u32 %s115, 1
        %s559 = smul.addr %s558, 128
        %s560 = scalar_lea.vmem [#allocation2], %s559
        // Predicated region
        $region37: #{tpu_custom_call.1} parent=35 // pred_check
          %p561 = pneg %p125
        $region38: #{tpu_custom_call.1} parent=35 // pred_check_branch
          %563 = sbr.rel (%p561) target = $region40
        $region39: #{tpu_custom_call.1} parent=35 // pred_region
          %s564 = smul.u32 2, %s18
          %s566 = ssub.s32 2048, 2048
          %567 = vsyncadd %s557, %s566
          %s568 = smul.addr %s564, 8
          %s569 = smul.addr %s568, 128
          %s570 = scalar_lea.hbm %s4, %s569
          %s571 = sshll.u32 %s560, 4
          %s572 = int_to_ptr.vmem [resolvable:$true] %s571
          %577 = dma.vmem_to_hbm [thread:$0]  %s572, 2048, %s570, %s557, 128, 128, 8
        $region40: #{tpu_custom_call.1} parent=35 // pred_fallthru
          _
      $region36: #{tpu_custom_call.1} parent=5 // pred_fallthru
        _
      %p578 = scmp.le.s32.totalorder 2, %s13
      // Predicated region
      $region41: #{tpu_custom_call.1} parent=5 // pred_check
        %p579 = pneg %p578
      $region42: #{tpu_custom_call.1} parent=5 // pred_check_branch
        %581 = sbr.rel (%p579) target = $region44
      $region43: #{tpu_custom_call.1} parent=5 // pred_region
        %s582 = ssub.s32 %s13, 2
        // Predicated region
        $region45: #{tpu_custom_call.1} parent=43 // pred_check
          %p583 = pneg %p131
        $region46: #{tpu_custom_call.1} parent=43 // pred_check_branch
          %585 = sbr.rel (%p583) target = $region48
        $region47: #{tpu_custom_call.1} parent=43 // pred_region
          %s586 = sand.u32 %s116, 1
          %s587 = scalar_lea.sflag [#allocation3], %s586
          %s588 = sand.u32 %s116, 1
          %s589 = smul.addr %s588, 128
          %s590 = scalar_lea.vmem [#allocation2], %s589
          %591 = dma.done %s587, 2048
        $region48: #{tpu_custom_call.1} parent=43 // pred_fallthru
          _
      $region44: #{tpu_custom_call.1} parent=5 // pred_fallthru
        _
    $region6: #{tpu_custom_call.1} parent=1 // loop_footer
      %s17 = sadd.s32 1, %s13
    $region7: #{tpu_custom_call.1} parent=1 // loop_footer_branch
      %12 = sbr.rel target = $region3
    $region8: #{tpu_custom_call.1} parent=1 // loop_exit
      _
    %592 = vsyncpa [#allocation3], 1
    %s593 = scalar_lea.sflag [#allocation3], 1
    %594 = vsyncpa %s593, 1

</llo_original>
